<compile_context>
chip_gen: v7x
topology: tpu7x:2x2x1
jax: 0.10.0
libtpu: 0.0.40
codegen_flags: <defaults>
</compile_context>

<pallas_src>
import jax
import jax.numpy as jnp
from jax.experimental import pallas as pl
from jax.experimental.pallas import tpu as pltpu


# ----------------------------------------------------------------------------
# Tuning knobs
# ----------------------------------------------------------------------------
_MAX_LANE_COLS = 2048               # lane-dense width cap (multiple of 128)
_MAX_TILE_BYTES = 8 * 1024 * 1024   # per-buffer tile ceiling (v6e/v7x sweet spot)
_SPLIT_BYTES = 4 * 1024 * 1024      # force >= 2 blocks above this (megacore)
_MIN_PALLAS_BYTES = 1024            # tiny captures skip the kernel

_TPU_BUDGET_CACHE = None


def _round_up(v, m):
    return -(-v // m) * m


def _row_multiple(itemsize):
    # Minimum sublane multiple for dense packing: f32 -> 8, bf16 -> 16, int8 -> 32.
    return {4: 8, 2: 16, 1: 32}.get(int(itemsize), 8)


def _tile_budget():
    """(tile_bytes, vmem_limit_bytes) derived from the actual chip's VMEM."""
    global _TPU_BUDGET_CACHE
    if _TPU_BUDGET_CACHE is not None:
        return _TPU_BUDGET_CACHE
    vmem_cap = 128 * 1024 * 1024  # conservative fallback (v5e/v6e physical)
    try:
        info = pltpu.get_tpu_info()
        vmem_cap = int(getattr(info, "vmem_capacity_bytes", vmem_cap))
    except Exception:
        pass
    # 2 in + 2 out double-buffers => 4 * tile must leave headroom under VMEM.
    tile_bytes = max(1 << 20, min(_MAX_TILE_BYTES, vmem_cap // 8))
    vmem_limit = int(min(vmem_cap * 3 // 4, 4 * tile_bytes + (4 << 20)))
    _TPU_BUDGET_CACHE = (int(tile_bytes), vmem_limit)
    return _TPU_BUDGET_CACHE


def _choose_lane_dense_cols(n128):
    """Largest cols = 128*k with k | (n128 // 128) and cols <= _MAX_LANE_COLS.

    n128 must be a positive multiple of 128, so this always succeeds.
    """
    base = n128 // 128
    max_k = min(base, _MAX_LANE_COLS // 128)
    for k in range(max_k, 0, -1):
        if base % k == 0:
            return 128 * k
    return 128


def _capture_kernel(x_ref, o_ref):
    # Pure snapshot: stream one row tile HBM -> VMEM -> HBM.
    o_ref[...] = x_ref[...]


def _capture_2d(x2d: jax.Array) -> jax.Array:
    """Tiled Pallas copy of a lane-dense 2-D slab (rows, cols % 128 == 0)."""
    rows, cols = x2d.shape
    itemsize = jnp.dtype(x2d.dtype).itemsize
    row_mult = _row_multiple(itemsize)
    tile_bytes, vmem_limit = _tile_budget()

    row_bytes = cols * itemsize               # <= 2048 * 8 B, far below tile_bytes
    total_bytes = rows * row_bytes

    # Rows per tile targeting ~tile_bytes; multiple of row_mult unless the
    # block ends up being the full extent (always a legal block shape).
    tile_r = max(row_mult, (tile_bytes // max(1, row_bytes)) // row_mult * row_mult)
    # Megacore: keep >= 2 balanced blocks on large slabs so ("parallel",)
    # actually shards across both TensorCores on v7x.
    if total_bytes >= _SPLIT_BYTES and rows >= 2 * row_mult:
        tile_r = min(tile_r, _round_up(pl.cdiv(rows, 2), row_mult))
    tile_r = min(tile_r, rows)

    grid = (pl.cdiv(rows, tile_r),)

    return pl.pallas_call(
        _capture_kernel,
        out_shape=jax.ShapeDtypeStruct((rows, cols), x2d.dtype),
        grid_spec=pltpu.PrefetchScalarGridSpec(
            num_scalar_prefetch=0,
            grid=grid,
            in_specs=[pl.BlockSpec((tile_r, cols), lambda i: (i, 0))],
            out_specs=pl.BlockSpec((tile_r, cols), lambda i: (i, 0)),
        ),
        compiler_params=pltpu.CompilerParams(
            # Independent row tiles: shard across both TensorCores on v7x;
            # harmless single-core loop on v5e/v6e.
            dimension_semantics=("parallel",),
            vmem_limit_bytes=vmem_limit,
        ),
        cost_estimate=pl.CostEstimate(
            flops=0,
            transcendentals=0,
            bytes_accessed=2 * rows * cols * itemsize,
        ),
    )(x2d)


@jax.jit
def _capture_big(x: jax.Array) -> jax.Array:
    """Lane-dense body through the Pallas copy kernel; tiny (<128-elem) tail
    handled outside the kernel so the kernel never emits masked partial stores.
    Compiled once per (shape, dtype) thanks to jit caching."""
    n = x.size
    flat = x.reshape(n)                 # assumes default row-major layout
    body = (n // 128) * 128
    cols = _choose_lane_dense_cols(body)
    out = _capture_2d(flat[:body].reshape(body // cols, cols)).reshape(body)
    if body != n:
        out = jnp.concatenate([out, flat[body:]])
    return out.reshape(x.shape)


def capture(x, force_materialize: bool = True) -> jax.Array:
    """Snapshot an arbitrary-rank array via the tiled Pallas copy kernel.

    JAX arrays are immutable, so when the caller does not donate/overwrite its
    buffers the array itself is already a valid snapshot (force_materialize=False
    skips the copy entirely)."""
    x = jnp.asarray(x)
    if not force_materialize:
        return x
    nbytes = x.size * jnp.dtype(x.dtype).itemsize
    if x.ndim == 0 or x.size < 128 or nbytes < _MIN_PALLAS_BYTES:
        # Kernel launch + (8,128) padding would dwarf the data moved.
        return x
    return _capture_big(x)


class Catcher:
    """JAX analogue of sparseml's Catcher module.

    The wrapped `module` is never executed (the original raises ValueError
    before calling it), so it is stored but unused.
    """

    def __init__(self, module, target_keys, force_materialize: bool = True):
        self.module = module
        self.cache = {key: [] for key in target_keys}
        self.target_keys = target_keys
        self.cache["inputs"] = []
        self.force_materialize = force_materialize

    def forward(self, *args, **kwargs):
        # TODO(synk): fuse all tensors captured in one forward() into a single
        # pallas_call with multiple in/out specs to amortize dispatch overhead.
        fm = self.force_materialize
        self.cache["inputs"].append(
            tuple(capture(a, fm) if hasattr(a, "shape") else a for a in args)
        )
        for key in self.target_keys:
            val = kwargs[key]
            self.cache[key].append(capture(val, fm) if hasattr(val, "shape") else val)
        # Mirror the original control flow exactly: abort the wrapped module.
        raise ValueError

    __call__ = forward

    def get_cache(self):
        return self.cache


if __name__ == "__main__":
    key = jax.random.PRNGKey(0)
    k1, k2, k3, k4, k5 = jax.random.split(key, 5)

    # Small LLM-style call signature: forward(hidden_states, attention_mask=, position_ids=)
    batch, seq, hidden = 2, 8, 32
    hidden_states = jax.random.normal(k1, (batch, seq, hidden), dtype=jnp.float32)
    attention_mask = (
        jax.random.uniform(k2, (batch, 1, seq, seq), dtype=jnp.float32) > 0.5
    ).astype(jnp.float32)
    position_ids = jnp.tile(jnp.arange(seq, dtype=jnp.int32)[None, :], (batch, 1))

    # Medium activation: single lane-dense tile path ((288, 2048) slab).
    big_act = jax.random.normal(k3, (3, 384, 512), dtype=jnp.float32)
    # ~5.6 MiB activation: exercises the multi-tile + megacore split path
    # ((760, 1920) slab -> two blocks of 384 / 376 rows).
    split_act = jax.random.normal(k4, (5, 380, 768), dtype=jnp.float32)
    # Non-128-divisible element count -> lane-dense body + 16-element tail.
    odd_act = jax.random.normal(k5, (100, 100), dtype=jnp.float32)

    catcher = Catcher(module=None, target_keys=["attention_mask", "position_ids"])

    raised = False
    try:
        catcher(
            hidden_states,
            big_act,
            split_act,
            odd_act,
            attention_mask=attention_mask,
            position_ids=position_ids,
        )
    except ValueError:
        raised = True
    assert raised, "Catcher.forward must raise ValueError"

    cache = catcher.get_cache()
    c_hidden, c_big, c_split, c_odd = cache["inputs"][0]
    c_mask = cache["attention_mask"][0]
    c_pos = cache["position_ids"][0]
    jax.block_until_ready((c_hidden, c_big, c_split, c_odd, c_mask, c_pos))

    assert c_hidden.shape == hidden_states.shape
    assert c_hidden.dtype == hidden_states.dtype
    assert bool(jnp.array_equal(c_hidden, hidden_states))
    assert c_big.shape == big_act.shape
    assert bool(jnp.array_equal(c_big, big_act))
    assert c_split.shape == split_act.shape
    assert bool(jnp.array_equal(c_split, split_act))
    assert c_odd.shape == odd_act.shape
    assert bool(jnp.array_equal(c_odd, odd_act))
    assert bool(jnp.array_equal(c_mask, attention_mask))
    assert bool(jnp.array_equal(c_pos, position_ids))

    print("KERNEL_OK")
</pallas_src>

<mosaic_0001>
module attributes {stable_mosaic.version = 11 : i64} {
  func.func @_capture_kernel(%arg0: i32, %arg1: memref<1x512xf32, #tpu.memory_space<vmem>>, %arg2: memref<1x512xf32, #tpu.memory_space<vmem>>) attributes {dimension_semantics = [#tpu.dimension_semantics<parallel>], iteration_bounds = array<i64: 1>, scalar_prefetch = 0 : i64, scratch_operands = 0 : i64, tpu.core_type = #tpu.core_type<tc>, window_params = [{transform_indices = @transform_0, window_bounds = array<i64: 1, 512>}, {transform_indices = @transform_1, window_bounds = array<i64: 1, 512>}]} {
    %c0 = arith.constant 0 : index
    %c0_0 = arith.constant 0 : index
    %0 = vector.load %arg1[%c0, %c0_0] : memref<1x512xf32, #tpu.memory_space<vmem>>, vector<1x512xf32>
    %c0_1 = arith.constant 0 : index
    %c0_2 = arith.constant 0 : index
    %1 = vector.load %arg2[%c0_1, %c0_2] : memref<1x512xf32, #tpu.memory_space<vmem>>, vector<1x512xf32>
    tpu.vector_store %arg2[%c0_1, %c0_2], %0 {strides = array<i32>} : memref<1x512xf32, #tpu.memory_space<vmem>>, vector<1x512xf32>,
    return
  }
  func.func @transform_0(%arg0: i32) -> (i32, i32) {
    %c0_i32 = arith.constant 0 : i32
    %c0_i32_0 = arith.constant 0 : i32
    return %arg0, %c0_i32 : i32, i32
  }
  func.func @transform_1(%arg0: i32) -> (i32, i32) {
    %c0_i32 = arith.constant 0 : i32
    %c0_i32_0 = arith.constant 0 : i32
    return %arg0, %c0_i32 : i32, i32
  }
}

</mosaic_0001>

<llo_original>
// kernel: _capture_big.1
$region0: #{_capture_big.1}
  #allocation0 [shape = 'u32[]', space=smem, size = 0x4, offset = 0x4, fixed_abs, tag = 'smem constant byte address 0x4 - core index']
  #allocation1 [shape = 'u32[144,128]{1,0:T(1,128)}', space=vmem, size = 0x12000, scoped, tag = 'internal scratch']
  %s0 = inlined_call_operand.vmem [shape: f32[1,512], index: 0, kind: input, shape index: {}]
  %s1 = inlined_call_operand.vmem [shape: f32[1,512], index: 1, kind: output, shape index: {}]
  %s2 = sld [smem:[#allocation0]]
  $region14: #{_capture_big.1} parent=0
    _
  %s4 = ssub.s32 1, %s2
  %s5 = scalar_select 0, %s4, %s2
  // Predicated region
  $region2: #{_capture_big.1} parent=0 // pred_check
    _
  $region3: #{_capture_big.1} parent=0 // pred_check_branch
    %7 = sbr.rel (0) target = $region5
  $region4: #{_capture_big.1} parent=0 // pred_region
    _
  $region5: #{_capture_big.1} parent=0 // pred_fallthru
    _
  %v8 = vld [vmem:[%s0] sm:$0xf]
  %v9 = vlaneseq
  %vm10 = vcmp.ge.s32.totalorder %v9, 0
  %vm11 = vcmp.lt.s32.totalorder %v9, 512
  %vm12 = vmand %vm10, %vm11
  %13 = vst.msk [vmem:[%s1] sm:$0xf] %vm12, %v8
  // Predicated region
  $region6: #{_capture_big.1} parent=0 // pred_check
    _
  $region7: #{_capture_big.1} parent=0 // pred_check_branch
    %15 = sbr.rel (0) target = $region9
  $region8: #{_capture_big.1} parent=0 // pred_region
    _
  $region9: #{_capture_big.1} parent=0 // pred_fallthru
    _
  // Predicated region
  $region10: #{_capture_big.1} parent=0 // pred_check
    _
  $region11: #{_capture_big.1} parent=0 // pred_check_branch
    %17 = sbr.rel (0) target = $region13
  $region12: #{_capture_big.1} parent=0 // pred_region
    _
  $region13: #{_capture_big.1} parent=0 // pred_fallthru
    _

</llo_original>
